<compile_context>
chip_gen: v6e
topology: v6e:2x2x1
jax: 0.10.0
libtpu: 0.0.40
codegen_flags: <defaults>
</compile_context>

<pallas_src>
import numpy as np
import jax
import jax.numpy as jnp
from jax.experimental import pallas as pl
from jax.experimental.pallas import tpu as pltpu

IN_DIM = 68 * 2      # 136
HID = 100
LAT = 10
HID_P = 128          # hidden padded to a full 128-lane register
LAT_P = 128          # latent padded to a full 128-lane register
OW_ROWS = 20         # latent-overwrite rows touched by the original loop (0..19)
OW_ROWS_P = 24       # padded to a multiple of 8 sublanes
NEG_SLOPE = 0.01     # PyTorch nn.LeakyReLU default
MAX_TB = 1024        # max batch rows per grid step
MIN_SPLIT_B = 256    # batches >= this always get >= 2 (even) grid steps (megacore)


def _leaky_relu(x):
    return jnp.where(x > 0, x, NEG_SLOPE * x)


def autoencoder_kernel(x_ref,
                       w1_ref, b1_ref, w2_ref, b2_ref,
                       mask_ref, vals_ref,
                       w3_ref, b3_ref, w4_ref, b4_ref,
                       o_ref, z_scr):
    # ---- encoder (bf16 MXU inputs, f32 accumulate, f32 epilogue) ----
    h1 = _leaky_relu(
        jnp.dot(x_ref[...], w1_ref[...], preferred_element_type=jnp.float32)
        + b1_ref[...])
    z = _leaky_relu(
        jnp.dot(h1.astype(jnp.bfloat16), w2_ref[...],
                preferred_element_type=jnp.float32) + b2_ref[...])

    # ---- latent overwrite (z[int(row)][column] = Z[i][j]) ----
    # Only global rows 0..19 are ever overwritten, so the tiny resident
    # (24, 128) mask/vals tables are applied to the head of the first batch
    # tile only; nothing overwrite-related is streamed per batch row.
    z_scr[...] = z

    @pl.when(pl.program_id(0) == 0)
    def _():
        head = z_scr[:OW_ROWS_P, :]
        z_scr[:OW_ROWS_P, :] = jnp.where(mask_ref[...] > 0, vals_ref[...], head)

    z = z_scr[...]

    # ---- decoder ----
    h2 = _leaky_relu(
        jnp.dot(z.astype(jnp.bfloat16), w3_ref[...],
                preferred_element_type=jnp.float32) + b3_ref[...])
    out = jnp.dot(h2.astype(jnp.bfloat16), w4_ref[...],
                  preferred_element_type=jnp.float32) + b4_ref[...]
    o_ref[...] = jax.nn.sigmoid(out).astype(o_ref.dtype)


def _round_up(n, m):
    return ((n + m - 1) // m) * m


def _cdiv(a, b):
    return -(-a // b)


def _pad2d(a, rows, cols, dtype):
    a = jnp.asarray(a, dtype)
    return jnp.pad(a, ((0, rows - a.shape[0]), (0, cols - a.shape[1])))


def _choose_batch_tiling(B):
    """Batch tile / step count: minimal tail padding, even #steps for 2-TC split."""
    n_steps = _cdiv(B, MAX_TB)
    if n_steps == 1 and B >= MIN_SPLIT_B:
        n_steps = 2                      # give v7x's second TensorCore a tile
    if n_steps > 1 and n_steps % 2 == 1:
        n_steps += 1                     # balanced split across the 2 TCs
    tb = max(_round_up(_cdiv(B, n_steps), 8), OW_ROWS_P)
    return tb, n_steps


def landmark_autoencoder_forward(x, params, mask, vals):
    """Fused MLP-autoencoder forward. Returns bf16 reconstruction of shape (B, 136)."""
    B = x.shape[0]
    assert B >= OW_ROWS, "latent overwrite touches rows 0..19; need batch >= 20"
    assert mask.shape[0] <= OW_ROWS_P and vals.shape[0] <= OW_ROWS_P

    tb, n_steps = _choose_batch_tiling(B)
    b_pad = tb * n_steps

    # Streamed tensors + weights in bf16 (halves DMA bytes, native bf16 MXU);
    # biases and the tiny resident overwrite tables stay f32.
    xp = _pad2d(x, b_pad, IN_DIM, jnp.bfloat16)
    w1 = _pad2d(params["w1"], IN_DIM, HID_P, jnp.bfloat16)
    b1 = _pad2d(params["b1"], 1, HID_P, jnp.float32)
    w2 = _pad2d(params["w2"], HID_P, LAT_P, jnp.bfloat16)
    b2 = _pad2d(params["b2"], 1, LAT_P, jnp.float32)
    w3 = _pad2d(params["w3"], LAT_P, HID_P, jnp.bfloat16)
    b3 = _pad2d(params["b3"], 1, HID_P, jnp.float32)
    w4 = _pad2d(params["w4"], HID_P, IN_DIM, jnp.bfloat16)
    b4 = _pad2d(params["b4"], 1, IN_DIM, jnp.float32)
    maskp = _pad2d(mask, OW_ROWS_P, LAT_P, jnp.float32)
    valsp = _pad2d(vals, OW_ROWS_P, LAT_P, jnp.float32)

    grid = (n_steps,)

    def batch_spec(cols):
        # rides the batch grid; double-buffered by the Pallas pipeline
        return pl.BlockSpec((tb, cols), lambda i: (i, 0))

    def resident_spec(arr):
        # same block every grid step -> stays resident in VMEM
        return pl.BlockSpec(arr.shape, lambda i: (0, 0))

    flops = 2 * b_pad * (IN_DIM * HID + HID * LAT + LAT * HID + HID * IN_DIM)
    bytes_accessed = (
        xp.size * 2 + b_pad * IN_DIM * 2
        + sum(int(a.size) * a.dtype.itemsize
              for a in (w1, b1, w2, b2, w3, b3, w4, b4, maskp, valsp)))

    out = pl.pallas_call(
        autoencoder_kernel,
        out_shape=jax.ShapeDtypeStruct((b_pad, IN_DIM), jnp.bfloat16),
        grid=grid,
        in_specs=[
            batch_spec(IN_DIM),                      # x
            resident_spec(w1), resident_spec(b1),    # encoder layer 1
            resident_spec(w2), resident_spec(b2),    # encoder layer 2
            resident_spec(maskp), resident_spec(valsp),  # latent overwrite tables
            resident_spec(w3), resident_spec(b3),    # decoder layer 1
            resident_spec(w4), resident_spec(b4),    # decoder layer 2
        ],
        out_specs=batch_spec(IN_DIM),
        scratch_shapes=[pltpu.VMEM((tb, LAT_P), jnp.float32)],  # latent staging
        compiler_params=pltpu.CompilerParams(
            dimension_semantics=("parallel",)),      # shard batch tiles on v7x's 2 TCs
        cost_estimate=pl.CostEstimate(
            flops=flops,
            transcendentals=b_pad * IN_DIM,
            bytes_accessed=bytes_accessed),
    )(xp, w1, b1, w2, b2, maskp, valsp, w3, b3, w4, b4)

    return out[:B]


def _linear_init(key, fan_in, fan_out):
    """PyTorch nn.Linear default: U(-1/sqrt(fan_in), 1/sqrt(fan_in))."""
    kw, kb = jax.random.split(key)
    bound = 1.0 / np.sqrt(fan_in)
    # stored already transposed to (in, out) for x @ W
    w = jax.random.uniform(kw, (fan_in, fan_out), jnp.float32, -bound, bound)
    b = jax.random.uniform(kb, (1, fan_out), jnp.float32, -bound, bound)
    return w, b


def make_params(key):
    k1, k2, k3, k4 = jax.random.split(key, 4)
    w1, b1 = _linear_init(k1, IN_DIM, HID)   # encoder Linear(136, 100)
    w2, b2 = _linear_init(k2, HID, LAT)      # encoder Linear(100, 10)
    w3, b3 = _linear_init(k3, LAT, HID)      # decoder Linear(10, 100)
    w4, b4 = _linear_init(k4, HID, IN_DIM)   # decoder Linear(100, 136)
    return dict(w1=w1, b1=b1, w2=w2, b2=b2, w3=w3, b3=b3, w4=w4, b4=b4)


def make_latent_overwrite():
    """(20, 10) mask/vals tables reproducing the z[row][col] = Z[i][j] scatter."""
    # TODO(synk): original Z / Z_indices come from .pckl files; synthesized deterministically here.
    Z = np.linspace(0.0, 1.0, 2 * LAT, dtype=np.float32).reshape(2, LAT)
    Z_indices = [3, 7]
    mask = np.zeros((OW_ROWS, LAT), dtype=np.float32)
    vals = np.zeros((OW_ROWS, LAT), dtype=np.float32)
    for i, column in enumerate(Z_indices):
        z_rows = np.linspace(i * 10, i * 10 + 9, 10)
        for j, row in enumerate(z_rows):
            mask[int(row), column] = 1.0
            vals[int(row), column] = Z[i][j]
    return jnp.asarray(mask), jnp.asarray(vals)


def reference_forward(x, params, mask, vals):
    """Pure-JAX f32 reference mirroring the PyTorch forward (unpadded weights)."""
    B = x.shape[0]
    h1 = _leaky_relu(x @ params["w1"] + params["b1"])
    z = _leaky_relu(h1 @ params["w2"] + params["b2"])
    full_mask = jnp.zeros((B, LAT), jnp.float32).at[:mask.shape[0]].set(mask)
    full_vals = jnp.zeros((B, LAT), jnp.float32).at[:vals.shape[0]].set(vals)
    z = jnp.where(full_mask > 0, full_vals, z)
    h2 = _leaky_relu(z @ params["w3"] + params["b3"])
    return jax.nn.sigmoid(h2 @ params["w4"] + params["b4"])


if __name__ == "__main__":
    key = jax.random.PRNGKey(0)
    k_params, k_x1, k_x2 = jax.random.split(key, 3)
    params = make_params(k_params)
    mask, vals = make_latent_overwrite()

    # bf16 streaming/weights -> compare against the f32 reference with a loose tolerance.
    RTOL, ATOL = 2e-2, 2e-2

    # Small case (B >= 20 so the latent-overwrite rows 0..19 exist): single grid step.
    B1 = 24
    x1 = jax.random.uniform(k_x1, (B1, IN_DIM), jnp.float32)  # landmarks in [0, 1]
    out1 = jax.block_until_ready(landmark_autoencoder_forward(x1, params, mask, vals))
    ref1 = reference_forward(x1, params, mask, vals)
    np.testing.assert_allclose(np.asarray(out1.astype(jnp.float32)),
                               np.asarray(ref1), rtol=RTOL, atol=ATOL)

    # Larger case: exercises the even 2-step batch grid + ragged-tail padding.
    B2 = 1200
    x2 = jax.random.uniform(k_x2, (B2, IN_DIM), jnp.float32)
    out2 = jax.block_until_ready(landmark_autoencoder_forward(x2, params, mask, vals))
    ref2 = reference_forward(x2, params, mask, vals)
    np.testing.assert_allclose(np.asarray(out2.astype(jnp.float32)),
                               np.asarray(ref2), rtol=RTOL, atol=ATOL)

    print("KERNEL_OK")
</pallas_src>

<mosaic_0001>
module attributes {stable_mosaic.version = 11 : i64} {
  func.func @autoencoder_kernel(%arg0: i32, %arg1: memref<24x136xbf16, #tpu.memory_space<vmem>>, %arg2: memref<136x128xbf16, #tpu.memory_space<vmem>>, %arg3: memref<1x128xf32, #tpu.memory_space<vmem>>, %arg4: memref<128x128xbf16, #tpu.memory_space<vmem>>, %arg5: memref<1x128xf32, #tpu.memory_space<vmem>>, %arg6: memref<24x128xf32, #tpu.memory_space<vmem>>, %arg7: memref<24x128xf32, #tpu.memory_space<vmem>>, %arg8: memref<128x128xbf16, #tpu.memory_space<vmem>>, %arg9: memref<1x128xf32, #tpu.memory_space<vmem>>, %arg10: memref<128x136xbf16, #tpu.memory_space<vmem>>, %arg11: memref<1x136xf32, #tpu.memory_space<vmem>>, %arg12: memref<24x136xbf16, #tpu.memory_space<vmem>>, %arg13: memref<24x128xf32, #tpu.memory_space<vmem>>) attributes {dimension_semantics = [#tpu.dimension_semantics<parallel>], iteration_bounds = array<i64: 1>, scalar_prefetch = 0 : i64, scratch_operands = 1 : i64, tpu.core_type = #tpu.core_type<tc>, window_params = [{transform_indices = @transform_0, window_bounds = array<i64: 24, 136>}, {pipeline_mode = #tpu.pipeline_mode<synchronous>, transform_indices = @transform_1, window_bounds = array<i64: 136, 128>}, {pipeline_mode = #tpu.pipeline_mode<synchronous>, transform_indices = @transform_2, window_bounds = array<i64: 1, 128>}, {pipeline_mode = #tpu.pipeline_mode<synchronous>, transform_indices = @transform_3, window_bounds = array<i64: 128, 128>}, {pipeline_mode = #tpu.pipeline_mode<synchronous>, transform_indices = @transform_4, window_bounds = array<i64: 1, 128>}, {pipeline_mode = #tpu.pipeline_mode<synchronous>, transform_indices = @transform_5, window_bounds = array<i64: 24, 128>}, {pipeline_mode = #tpu.pipeline_mode<synchronous>, transform_indices = @transform_6, window_bounds = array<i64: 24, 128>}, {pipeline_mode = #tpu.pipeline_mode<synchronous>, transform_indices = @transform_7, window_bounds = array<i64: 128, 128>}, {pipeline_mode = #tpu.pipeline_mode<synchronous>, transform_indices = @transform_8, window_bounds = array<i64: 1, 128>}, {pipeline_mode = #tpu.pipeline_mode<synchronous>, transform_indices = @transform_9, window_bounds = array<i64: 128, 136>}, {pipeline_mode = #tpu.pipeline_mode<synchronous>, transform_indices = @transform_10, window_bounds = array<i64: 1, 136>}, {transform_indices = @transform_11, window_bounds = array<i64: 24, 136>}]} {
    %c0 = arith.constant 0 : index
    %c0_0 = arith.constant 0 : index
    %0 = vector.load %arg1[%c0, %c0_0] : memref<24x136xbf16, #tpu.memory_space<vmem>>, vector<24x136xbf16>
    %c0_1 = arith.constant 0 : index
    %c0_2 = arith.constant 0 : index
    %1 = vector.load %arg2[%c0_1, %c0_2] : memref<136x128xbf16, #tpu.memory_space<vmem>>, vector<136x128xbf16>
    %cst = arith.constant dense<0.000000e+00> : vector<24x128xf32>
    %2 = tpu.matmul %0, %1, %cst {dimension_numbers = #tpu.dot_dimension_numbers<[1], [0], [0], [1], [0, 0, 1, 1], [], []>} : vector<24x136xbf16>, vector<136x128xbf16>, vector<24x128xf32> -> vector<24x128xf32>
    %c0_3 = arith.constant 0 : index
    %c0_4 = arith.constant 0 : index
    %3 = vector.load %arg3[%c0_3, %c0_4] : memref<1x128xf32, #tpu.memory_space<vmem>>, vector<1x128xf32>
    %4 = vector.broadcast %3 : vector<1x128xf32> to vector<24x128xf32>
    %5 = arith.addf %2, %4 : vector<24x128xf32>
    %cst_5 = arith.constant 0.000000e+00 : f32
    %6 = vector.broadcast %cst_5 : f32 to vector<24x128xf32>
    %7 = arith.cmpf ogt, %5, %6 : vector<24x128xf32>
    %cst_6 = arith.constant 0.00999999977 : f32
    %8 = vector.broadcast %cst_6 : f32 to vector<24x128xf32>
    %9 = arith.mulf %8, %5 : vector<24x128xf32>
    %10 = arith.select %7, %5, %9 : vector<24x128xi1>, vector<24x128xf32>
    %11 = arith.truncf %10 : vector<24x128xf32> to vector<24x128xbf16>
    %c0_7 = arith.constant 0 : index
    %c0_8 = arith.constant 0 : index
    %12 = vector.load %arg4[%c0_7, %c0_8] : memref<128x128xbf16, #tpu.memory_space<vmem>>, vector<128x128xbf16>
    %cst_9 = arith.constant dense<0.000000e+00> : vector<24x128xf32>
    %13 = tpu.matmul %11, %12, %cst_9 {dimension_numbers = #tpu.dot_dimension_numbers<[1], [0], [0], [1], [0, 0, 1, 1], [], []>} : vector<24x128xbf16>, vector<128x128xbf16>, vector<24x128xf32> -> vector<24x128xf32>
    %c0_10 = arith.constant 0 : index
    %c0_11 = arith.constant 0 : index
    %14 = vector.load %arg5[%c0_10, %c0_11] : memref<1x128xf32, #tpu.memory_space<vmem>>, vector<1x128xf32>
    %15 = vector.broadcast %14 : vector<1x128xf32> to vector<24x128xf32>
    %16 = arith.addf %13, %15 : vector<24x128xf32>
    %cst_12 = arith.constant 0.000000e+00 : f32
    %17 = vector.broadcast %cst_12 : f32 to vector<24x128xf32>
    %18 = arith.cmpf ogt, %16, %17 : vector<24x128xf32>
    %cst_13 = arith.constant 0.00999999977 : f32
    %19 = vector.broadcast %cst_13 : f32 to vector<24x128xf32>
    %20 = arith.mulf %19, %16 : vector<24x128xf32>
    %21 = arith.select %18, %16, %20 : vector<24x128xi1>, vector<24x128xf32>
    %c0_14 = arith.constant 0 : index
    %c0_15 = arith.constant 0 : index
    %22 = vector.load %arg13[%c0_14, %c0_15] : memref<24x128xf32, #tpu.memory_space<vmem>>, vector<24x128xf32>
    tpu.vector_store %arg13[%c0_14, %c0_15], %21 {strides = array<i32>} : memref<24x128xf32, #tpu.memory_space<vmem>>, vector<24x128xf32>,
    %c0_i32 = arith.constant 0 : i32
    %23 = arith.cmpi eq, %arg0, %c0_i32 : i32
    %24 = arith.extui %23 : i1 to i32
    %c0_i32_16 = arith.constant 0 : i32
    %25 = arith.cmpi ne, %24, %c0_i32_16 : i32
    scf.if %25 {
      %c0_34 = arith.constant 0 : index
      %c0_35 = arith.constant 0 : index
      %51 = vector.load %arg13[%c0_34, %c0_35] : memref<24x128xf32, #tpu.memory_space<vmem>>, vector<24x128xf32>
      %c0_36 = arith.constant 0 : index
      %c0_37 = arith.constant 0 : index
      %52 = vector.load %arg6[%c0_36, %c0_37] : memref<24x128xf32, #tpu.memory_space<vmem>>, vector<24x128xf32>
      %cst_38 = arith.constant 0.000000e+00 : f32
      %53 = vector.broadcast %cst_38 : f32 to vector<24x128xf32>
      %54 = arith.cmpf ogt, %52, %53 : vector<24x128xf32>
      %c0_39 = arith.constant 0 : index
      %c0_40 = arith.constant 0 : index
      %55 = vector.load %arg7[%c0_39, %c0_40] : memref<24x128xf32, #tpu.memory_space<vmem>>, vector<24x128xf32>
      %56 = arith.select %54, %55, %51 : vector<24x128xi1>, vector<24x128xf32>
      %c0_41 = arith.constant 0 : index
      %c0_42 = arith.constant 0 : index
      %57 = vector.load %arg13[%c0_41, %c0_42] : memref<24x128xf32, #tpu.memory_space<vmem>>, vector<24x128xf32>
      tpu.vector_store %arg13[%c0_41, %c0_42], %56 {strides = array<i32>} : memref<24x128xf32, #tpu.memory_space<vmem>>, vector<24x128xf32>,
    } else {
    }
    %c0_17 = arith.constant 0 : index
    %c0_18 = arith.constant 0 : index
    %26 = vector.load %arg13[%c0_17, %c0_18] : memref<24x128xf32, #tpu.memory_space<vmem>>, vector<24x128xf32>
    %27 = arith.truncf %26 : vector<24x128xf32> to vector<24x128xbf16>
    %c0_19 = arith.constant 0 : index
    %c0_20 = arith.constant 0 : index
    %28 = vector.load %arg8[%c0_19, %c0_20] : memref<128x128xbf16, #tpu.memory_space<vmem>>, vector<128x128xbf16>
    %cst_21 = arith.constant dense<0.000000e+00> : vector<24x128xf32>
    %29 = tpu.matmul %27, %28, %cst_21 {dimension_numbers = #tpu.dot_dimension_numbers<[1], [0], [0], [1], [0, 0, 1, 1], [], []>} : vector<24x128xbf16>, vector<128x128xbf16>, vector<24x128xf32> -> vector<24x128xf32>
    %c0_22 = arith.constant 0 : index
    %c0_23 = arith.constant 0 : index
    %30 = vector.load %arg9[%c0_22, %c0_23] : memref<1x128xf32, #tpu.memory_space<vmem>>, vector<1x128xf32>
    %31 = vector.broadcast %30 : vector<1x128xf32> to vector<24x128xf32>
    %32 = arith.addf %29, %31 : vector<24x128xf32>
    %cst_24 = arith.constant 0.000000e+00 : f32
    %33 = vector.broadcast %cst_24 : f32 to vector<24x128xf32>
    %34 = arith.cmpf ogt, %32, %33 : vector<24x128xf32>
    %cst_25 = arith.constant 0.00999999977 : f32
    %35 = vector.broadcast %cst_25 : f32 to vector<24x128xf32>
    %36 = arith.mulf %35, %32 : vector<24x128xf32>
    %37 = arith.select %34, %32, %36 : vector<24x128xi1>, vector<24x128xf32>
    %38 = arith.truncf %37 : vector<24x128xf32> to vector<24x128xbf16>
    %c0_26 = arith.constant 0 : index
    %c0_27 = arith.constant 0 : index
    %39 = vector.load %arg10[%c0_26, %c0_27] : memref<128x136xbf16, #tpu.memory_space<vmem>>, vector<128x136xbf16>
    %cst_28 = arith.constant dense<0.000000e+00> : vector<24x136xf32>
    %40 = tpu.matmul %38, %39, %cst_28 {dimension_numbers = #tpu.dot_dimension_numbers<[1], [0], [0], [1], [0, 0, 1, 1], [], []>} : vector<24x128xbf16>, vector<128x136xbf16>, vector<24x136xf32> -> vector<24x136xf32>
    %c0_29 = arith.constant 0 : index
    %c0_30 = arith.constant 0 : index
    %41 = vector.load %arg11[%c0_29, %c0_30] : memref<1x136xf32, #tpu.memory_space<vmem>>, vector<1x136xf32>
    %42 = vector.broadcast %41 : vector<1x136xf32> to vector<24x136xf32>
    %43 = arith.addf %40, %42 : vector<24x136xf32>
    %44 = arith.negf %43 : vector<24x136xf32>
    %45 = math.exp %44 : vector<24x136xf32>
    %cst_31 = arith.constant 1.000000e+00 : f32
    %46 = vector.broadcast %cst_31 : f32 to vector<24x136xf32>
    %47 = arith.addf %46, %45 : vector<24x136xf32>
    %48 = arith.divf %46, %47 : vector<24x136xf32>
    %49 = arith.truncf %48 : vector<24x136xf32> to vector<24x136xbf16>
    %c0_32 = arith.constant 0 : index
    %c0_33 = arith.constant 0 : index
    %50 = vector.load %arg12[%c0_32, %c0_33] : memref<24x136xbf16, #tpu.memory_space<vmem>>, vector<24x136xbf16>
    tpu.vector_store %arg12[%c0_32, %c0_33], %49 {strides = array<i32>} : memref<24x136xbf16, #tpu.memory_space<vmem>>, vector<24x136xbf16>,
    return
  }
  func.func @transform_0(%arg0: i32) -> (i32, i32) {
    %c0_i32 = arith.constant 0 : i32
    %c0_i32_0 = arith.constant 0 : i32
    return %arg0, %c0_i32 : i32, i32
  }
  func.func @transform_1(%arg0: i32) -> (i32, i32) {
    %c0_i32 = arith.constant 0 : i32
    %c0_i32_0 = arith.constant 0 : i32
    %c0_i32_1 = arith.constant 0 : i32
    return %c0_i32, %c0_i32_0 : i32, i32
  }
  func.func @transform_2(%arg0: i32) -> (i32, i32) {
    %c0_i32 = arith.constant 0 : i32
    %c0_i32_0 = arith.constant 0 : i32
    %c0_i32_1 = arith.constant 0 : i32
    return %c0_i32, %c0_i32_0 : i32, i32
  }
  func.func @transform_3(%arg0: i32) -> (i32, i32) {
    %c0_i32 = arith.constant 0 : i32
    %c0_i32_0 = arith.constant 0 : i32
    %c0_i32_1 = arith.constant 0 : i32
    return %c0_i32, %c0_i32_0 : i32, i32
  }
  func.func @transform_4(%arg0: i32) -> (i32, i32) {
    %c0_i32 = arith.constant 0 : i32
    %c0_i32_0 = arith.constant 0 : i32
    %c0_i32_1 = arith.constant 0 : i32
    return %c0_i32, %c0_i32_0 : i32, i32
  }
  func.func @transform_5(%arg0: i32) -> (i32, i32) {
    %c0_i32 = arith.constant 0 : i32
    %c0_i32_0 = arith.constant 0 : i32
    %c0_i32_1 = arith.constant 0 : i32
    return %c0_i32, %c0_i32_0 : i32, i32
  }
  func.func @transform_6(%arg0: i32) -> (i32, i32) {
    %c0_i32 = arith.constant 0 : i32
    %c0_i32_0 = arith.constant 0 : i32
    %c0_i32_1 = arith.constant 0 : i32
    return %c0_i32, %c0_i32_0 : i32, i32
  }
  func.func @transform_7(%arg0: i32) -> (i32, i32) {
    %c0_i32 = arith.constant 0 : i32
    %c0_i32_0 = arith.constant 0 : i32
    %c0_i32_1 = arith.constant 0 : i32
    return %c0_i32, %c0_i32_0 : i32, i32
  }
  func.func @transform_8(%arg0: i32) -> (i32, i32) {
    %c0_i32 = arith.constant 0 : i32
    %c0_i32_0 = arith.constant 0 : i32
    %c0_i32_1 = arith.constant 0 : i32
    return %c0_i32, %c0_i32_0 : i32, i32
  }
  func.func @transform_9(%arg0: i32) -> (i32, i32) {
    %c0_i32 = arith.constant 0 : i32
    %c0_i32_0 = arith.constant 0 : i32
    %c0_i32_1 = arith.constant 0 : i32
    return %c0_i32, %c0_i32_0 : i32, i32
  }
  func.func @transform_10(%arg0: i32) -> (i32, i32) {
    %c0_i32 = arith.constant 0 : i32
    %c0_i32_0 = arith.constant 0 : i32
    %c0_i32_1 = arith.constant 0 : i32
    return %c0_i32, %c0_i32_0 : i32, i32
  }
  func.func @transform_11(%arg0: i32) -> (i32, i32) {
    %c0_i32 = arith.constant 0 : i32
    %c0_i32_0 = arith.constant 0 : i32
    return %arg0, %c0_i32 : i32, i32
  }
}

</mosaic_0001>

<llo_original>
// kernel: tpu_custom_call.1
$region0: #{tpu_custom_call.1}
  #allocation0 [shape = 'u32[]', space=smem, size = 0x4, offset = 0x4, fixed_abs, tag = 'smem constant byte address 0x4 - core index']
  #allocation1 [shape = 'u32[144,128]{1,0:T(1,128)}', space=vmem, size = 0x12000, scoped, tag = 'internal scratch']
  #allocation2 [shape = 'f32[24,128]{1,0:T(8,128)}', space=vmem, size = 0x3000, scoped, tag = 'scratch operand']
  %s0 = inlined_call_operand.hbm [shape: bf16[24,136], index: 0, kind: input, shape index: {}]
  %s1 = inlined_call_operand.vmem [shape: bf16[136,128], index: 1, kind: input, shape index: {}]
  %s2 = inlined_call_operand.vmem [shape: f32[1,128], index: 2, kind: input, shape index: {}]
  %s3 = inlined_call_operand.vmem [shape: bf16[128,128], index: 3, kind: input, shape index: {}]
  %s4 = inlined_call_operand.vmem [shape: f32[1,128], index: 4, kind: input, shape index: {}]
  %s5 = inlined_call_operand.hbm [shape: f32[24,128], index: 5, kind: input, shape index: {}]
  %s6 = inlined_call_operand.hbm [shape: f32[24,128], index: 6, kind: input, shape index: {}]
  %s7 = inlined_call_operand.vmem [shape: bf16[128,128], index: 7, kind: input, shape index: {}]
  %s8 = inlined_call_operand.vmem [shape: f32[1,128], index: 8, kind: input, shape index: {}]
  %s9 = inlined_call_operand.vmem [shape: bf16[128,136], index: 9, kind: input, shape index: {}]
  %s10 = inlined_call_operand.vmem [shape: f32[1,136], index: 10, kind: input, shape index: {}]
  %s11 = inlined_call_operand.hbm [shape: bf16[24,136], index: 11, kind: output, shape index: {}]
  %s12 = sld [smem:[#allocation0]]
  $region70: #{tpu_custom_call.1} parent=0
    _
  %s14 = ssub.s32 1, %s12
  %s15 = scalar_select 0, %s14, %s12
  $region1: #{tpu_custom_call.1} parent=0
    #allocation3 [shape = 'u8[12288]{0}', space=vmem, size = 0x3000, scoped, tag = 'input window, operand 0, single buffered']
    #allocation4 [shape = 's32[1]{0}', space=sflag, size = 0x4, scoped, tag = 'scoped memory for tpu_custom_call.1']
    #allocation5 [shape = 's32[1]{0}', space=sflag, size = 0x4, scoped, tag = 'scoped memory for tpu_custom_call.1']
    #allocation6 [shape = 'u8[12288]{0}', space=vmem, size = 0x3000, scoped, tag = 'input window, operand 5, single buffered']
    #allocation7 [shape = 's32[1]{0}', space=sflag, size = 0x4, scoped, tag = 'scoped memory for tpu_custom_call.1']
    #allocation8 [shape = 'u8[12288]{0}', space=vmem, size = 0x3000, scoped, tag = 'input window, operand 6, single buffered']
    #allocation9 [shape = 'u8[12288]{0}', space=vmem, size = 0x3000, scoped, tag = 'output window, operand 0, single buffered']
    %16 = vsyncpa [#allocation4], 0
    %17 = vsyncpa [#allocation7], 0
    %18 = vsyncpa [#allocation5], 0
    // Predicated region
    $region2: #{tpu_custom_call.1} parent=1 // pred_check
      _
    $region3: #{tpu_custom_call.1} parent=1 // pred_check_branch
      %20 = sbr.rel (0) target = $region5
    $region4: #{tpu_custom_call.1} parent=1 // pred_region
      %s22 = ssub.s32 384, 384
      %23 = vsyncadd [#allocation4], %s22
      %s24 = sshll.u32 [#allocation3], 4
      %s25 = int_to_ptr.vmem [resolvable:$true] %s24
      %30 = dma.hbm_to_vmem [thread:$0]  %s0, 384, %s25, [#allocation4], 128, 128, 8
    $region5: #{tpu_custom_call.1} parent=1 // pred_fallthru
      _
    // Predicated region
    $region6: #{tpu_custom_call.1} parent=1 // pred_check
      _
    $region7: #{tpu_custom_call.1} parent=1 // pred_check_branch
      %32 = sbr.rel (0) target = $region9
    $region8: #{tpu_custom_call.1} parent=1 // pred_region
      _
    $region9: #{tpu_custom_call.1} parent=1 // pred_fallthru
      _
    // Predicated region
    $region10: #{tpu_custom_call.1} parent=1 // pred_check
      _
    $region11: #{tpu_custom_call.1} parent=1 // pred_check_branch
      %34 = sbr.rel (0) target = $region13
    $region12: #{tpu_custom_call.1} parent=1 // pred_region
      _
    $region13: #{tpu_custom_call.1} parent=1 // pred_fallthru
      _
    // Predicated region
    $region14: #{tpu_custom_call.1} parent=1 // pred_check
      _
    $region15: #{tpu_custom_call.1} parent=1 // pred_check_branch
      %36 = sbr.rel (0) target = $region17
    $region16: #{tpu_custom_call.1} parent=1 // pred_region
      _
    $region17: #{tpu_custom_call.1} parent=1 // pred_fallthru
      _
    // Predicated region
    $region18: #{tpu_custom_call.1} parent=1 // pred_check
      _
    $region19: #{tpu_custom_call.1} parent=1 // pred_check_branch
      %38 = sbr.rel (0) target = $region21
    $region20: #{tpu_custom_call.1} parent=1 // pred_region
      _
    $region21: #{tpu_custom_call.1} parent=1 // pred_fallthru
      _
    // Predicated region
    $region22: #{tpu_custom_call.1} parent=1 // pred_check
      _
    $region23: #{tpu_custom_call.1} parent=1 // pred_check_branch
      %40 = sbr.rel (0) target = $region25
    $region24: #{tpu_custom_call.1} parent=1 // pred_region
      %s42 = ssub.s32 384, 384
      %43 = vsyncadd [#allocation7], %s42
      %s44 = sshll.u32 [#allocation6], 4
      %s45 = int_to_ptr.vmem [resolvable:$true] %s44
      %50 = dma.hbm_to_vmem [thread:$0]  %s5, 384, %s45, [#allocation7], 128, 128, 8
    $region25: #{tpu_custom_call.1} parent=1 // pred_fallthru
      _
    // Predicated region
    $region26: #{tpu_custom_call.1} parent=1 // pred_check
      _
    $region27: #{tpu_custom_call.1} parent=1 // pred_check_branch
      %52 = sbr.rel (0) target = $region29
    $region28: #{tpu_custom_call.1} parent=1 // pred_region
      %s54 = ssub.s32 384, 384
      %55 = vsyncadd [#allocation7], %s54
      %s56 = sshll.u32 [#allocation8], 4
      %s57 = int_to_ptr.vmem [resolvable:$true] %s56
      %62 = dma.hbm_to_vmem [thread:$0]  %s6, 384, %s57, [#allocation7], 128, 128, 8
    $region29: #{tpu_custom_call.1} parent=1 // pred_fallthru
      _
    // Predicated region
    $region30: #{tpu_custom_call.1} parent=1 // pred_check
      _
    $region31: #{tpu_custom_call.1} parent=1 // pred_check_branch
      %64 = sbr.rel (0) target = $region33
    $region32: #{tpu_custom_call.1} parent=1 // pred_region
      _
    $region33: #{tpu_custom_call.1} parent=1 // pred_fallthru
      _
    // Predicated region
    $region34: #{tpu_custom_call.1} parent=1 // pred_check
      _
    $region35: #{tpu_custom_call.1} parent=1 // pred_check_branch
      %66 = sbr.rel (0) target = $region37
    $region36: #{tpu_custom_call.1} parent=1 // pred_region
      _
    $region37: #{tpu_custom_call.1} parent=1 // pred_fallthru
      _
    // Predicated region
    $region38: #{tpu_custom_call.1} parent=1 // pred_check
      _
    $region39: #{tpu_custom_call.1} parent=1 // pred_check_branch
      %68 = sbr.rel (0) target = $region41
    $region40: #{tpu_custom_call.1} parent=1 // pred_region
      _
    $region41: #{tpu_custom_call.1} parent=1 // pred_fallthru
      _
    // Predicated region
    $region42: #{tpu_custom_call.1} parent=1 // pred_check
      _
    $region43: #{tpu_custom_call.1} parent=1 // pred_check_branch
      %70 = sbr.rel (0) target = $region45
    $region44: #{tpu_custom_call.1} parent=1 // pred_region
      _
    $region45: #{tpu_custom_call.1} parent=1 // pred_fallthru
      _
    // Predicated region
    $region46: #{tpu_custom_call.1} parent=1 // pred_check
      _
    $region47: #{tpu_custom_call.1} parent=1 // pred_check_branch
      %72 = sbr.rel (0) target = $region49
    $region48: #{tpu_custom_call.1} parent=1 // pred_region
      %73 = dma.done [#allocation4], 384
    $region49: #{tpu_custom_call.1} parent=1 // pred_fallthru
      _
    // Predicated region
    $region50: #{tpu_custom_call.1} parent=1 // pred_check
      _
    $region51: #{tpu_custom_call.1} parent=1 // pred_check_branch
      %75 = sbr.rel (0) target = $region53
    $region52: #{tpu_custom_call.1} parent=1 // pred_region
      %76 = dma.done [#allocation7], 384
    $region53: #{tpu_custom_call.1} parent=1 // pred_fallthru
      _
    // Predicated region
    $region54: #{tpu_custom_call.1} parent=1 // pred_check
      _
    $region55: #{tpu_custom_call.1} parent=1 // pred_check_branch
      %78 = sbr.rel (0) target = $region57
    $region56: #{tpu_custom_call.1} parent=1 // pred_region
      %79 = dma.done [#allocation7], 384
    $region57: #{tpu_custom_call.1} parent=1 // pred_fallthru
      _
    %v81 = vld [vmem:[#allocation3] sm:$0xff]
    %v82 = vld [vmem:[#allocation3 + $0x8] sm:$0xff]
    %v83 = vld [vmem:[#allocation3 + $0x10] sm:$0xff]
    %v84 = vld [vmem:[%s1] sm:$0xf]
    %v85 = vld [vmem:[%s1 + $0x4] sm:$0xf]
    %v86 = vld [vmem:[%s1 + $0x8] sm:$0xf]
    %v87 = vld [vmem:[%s1 + $0xc] sm:$0xf]
    %v88 = vld [vmem:[%s1 + $0x10] sm:$0xf]
    %v89 = vld [vmem:[%s1 + $0x14] sm:$0xf]
    %v90 = vld [vmem:[%s1 + $0x18] sm:$0xf]
    %v91 = vld [vmem:[%s1 + $0x1c] sm:$0xf]
    %v92 = vld [vmem:[%s1 + $0x20] sm:$0xf]
    %v93 = vld [vmem:[%s1 + $0x24] sm:$0xf]
    %v94 = vld [vmem:[%s1 + $0x28] sm:$0xf]
    %v95 = vld [vmem:[%s1 + $0x2c] sm:$0xf]
    %v96 = vld [vmem:[%s1 + $0x30] sm:$0xf]
    %v97 = vld [vmem:[%s1 + $0x34] sm:$0xf]
    %v98 = vld [vmem:[%s1 + $0x38] sm:$0xf]
    %v99 = vld [vmem:[%s1 + $0x3c] sm:$0xf]
    %v100 = vld [vmem:[%s1 + $0x40] sm:$0xf]
    %v101 = vld [vmem:[%s2] sm:$0x1]
    %v103 = vlaneseq
    %v104 = vshrl.u32 %v103, 7
    %v105 = vsub.s32 0, %v104
    %v106 = vrot.slane %v101, %v105
    %v111 = vunpack.c.l.b16 %v81
    %v112 = vunpack.c.h.b16 %v81
    %v113 = vunpack.c.l.b16 %v82
    %v114 = vunpack.c.h.b16 %v82
    %v115 = vunpack.c.l.b16 %v83
    %v116 = vunpack.c.h.b16 %v83
    %v117 = vpack.c.b16 %v113, %v111
    %v118 = vpack.c.b16 %v114, %v112
    %v119 = vpack.c.b16 %v115, %v115
    %v120 = vpack.c.b16 %v116, %v116
    %v140 = vunpack.c.l.b16 %v84
    %v141 = vunpack.c.l.b16 %v85
    %v142 = vunpack.c.l.b16 %v86
    %v143 = vunpack.c.l.b16 %v87
    %v144 = vunpack.c.l.b16 %v88
    %v145 = vunpack.c.l.b16 %v89
    %v146 = vunpack.c.l.b16 %v90
    %v147 = vunpack.c.l.b16 %v91
    %v148 = vunpack.c.l.b16 %v92
    %v149 = vunpack.c.l.b16 %v93
    %v150 = vunpack.c.l.b16 %v94
    %v151 = vunpack.c.l.b16 %v95
    %v152 = vunpack.c.l.b16 %v96
    %v153 = vunpack.c.l.b16 %v97
    %v154 = vunpack.c.l.b16 %v98
    %v155 = vunpack.c.l.b16 %v99
    %v156 = vunpack.c.l.b16 %v100
    %v157 = vpack.c.b16 %v141, %v140
    %v158 = vpack.c.b16 %v143, %v142
    %v159 = vpack.c.b16 %v145, %v144
    %v160 = vpack.c.b16 %v147, %v146
    %v161 = vpack.c.b16 %v149, %v148
    %v162 = vpack.c.b16 %v151, %v150
    %v163 = vpack.c.b16 %v153, %v152
    %v164 = vpack.c.b16 %v155, %v154
    %v165 = vpack.c.b16 %v156, %v156
    %vm174 = vcmask 64512
    %v176 = vsel %vm174, %v118, 0
    %v179 = vsel %vm174, %v120, 0
    %vm181 = vcmask 1043456
    %v183 = vsel %vm181, %v165, 0
    %185 = vmatprep.subr.bf16.mxu0 0
    %186 = vmatpush1.bf16.msra.mxu0 %v164
    %187 = vmatprep.subr.bf16.mxu0 0
    %188 = vmatpush1.bf16.msra.mxu0 %v163
    %189 = vmatprep.subr.bf16.mxu0 0
    %190 = vmatpush1.bf16.msra.mxu0 %v162
    %191 = vmatprep.subr.bf16.mxu0 0
    %192 = vmatpush1.bf16.msra.mxu0 %v161
    %193 = vmatprep.subr.bf16.mxu0 0
    %194 = vmatpush1.bf16.msra.mxu0 %v160
    %195 = vmatprep.subr.bf16.mxu0 0
    %196 = vmatpush1.bf16.msra.mxu0 %v159
    %197 = vmatprep.subr.bf16.mxu0 0
    %198 = vmatpush1.bf16.msra.mxu0 %v158
    %199 = vmatprep.subr.bf16.mxu0 0
    %200 = vmatpush1.bf16.msra.mxu0 %v157
    %201 = vmatprep.subr.bf16.mxu0 0
    %202 = vmatpush2.bf16.msra.mxu0 0
    %203 = vmatprep.subr.bf16.mxu0 0
    %204 = vmatpush2.bf16.msra.mxu0 0
    %205 = vmatprep.subr.bf16.mxu0 0
    %206 = vmatpush2.bf16.msra.mxu0 0
    %207 = vmatprep.subr.bf16.mxu0 0
    %208 = vmatpush2.bf16.msra.mxu0 0
    %209 = vmatprep.subr.bf16.mxu0 0
    %210 = vmatpush2.bf16.msra.mxu0 0
    %211 = vmatprep.subr.bf16.mxu0 0
    %212 = vmatpush2.bf16.msra.mxu0 0
    %213 = vmatprep.subr.bf16.mxu0 0
    %214 = vmatpush2.bf16.msra.mxu0 0
    %215 = vmatprep.subr.bf16.mxu0 0
    %216 = vmatpush2.bf16.msra.mxu0 %v183
    %217 = vmatprep.mubr.bf16.mxu0 %v176
    %218 = vmatmul.mubr.bf16.gmra.mxu0 %v117
    %v219 = vpop.f32.mrf.mxu0
    %v220 = vadd.f32 %v106, %v219
    %v221 = vpop.f32.mrf.mxu0
    %v222 = vpop.f32.mrf.mxu0
    %v223 = vadd.f32 %v106, %v222
    %v224 = vpop.f32.mrf.mxu0
    %225 = vmatprep.mubr.bf16.mxu0 %v179
    %226 = vmatmul.mubr.bf16.gmra.mxu0 %v119
    %v227 = vpop.f32.mrf.mxu0
    %v228 = vadd.f32 %v106, %v227
    %v229 = vpop.f32.mrf.mxu0
    %v230 = vpop.f32.mrf.mxu0
    %v231 = vpop.f32.mrf.mxu0
    %232 = vdwg.mxu0
    %vm233 = vcmp.gt.f32.partialorder %v220, 0.0
    %vm234 = vcmp.gt.f32.partialorder %v223, 0.0
    %vm235 = vcmp.gt.f32.partialorder %v228, 0.0
    %v236 = vmul.f32 %v220, 0.01
    %v237 = vmul.f32 %v223, 0.01
    %v238 = vmul.f32 %v228, 0.01
    %v239 = vsel %vm233, %v220, %v236
    %v240 = vsel %vm234, %v223, %v237
    %v241 = vsel %vm235, %v228, %v238
    %v242 = vpack.c.bf16 %v240, %v239
    %v243 = vpack.c.bf16 %v241, %v241
    %v244 = vld [vmem:[%s3] sm:$0xf]
    %v245 = vld [vmem:[%s3 + $0x4] sm:$0xf]
    %v246 = vld [vmem:[%s3 + $0x8] sm:$0xf]
    %v247 = vld [vmem:[%s3 + $0xc] sm:$0xf]
    %v248 = vld [vmem:[%s3 + $0x10] sm:$0xf]
    %v249 = vld [vmem:[%s3 + $0x14] sm:$0xf]
    %v250 = vld [vmem:[%s3 + $0x18] sm:$0xf]
    %v251 = vld [vmem:[%s3 + $0x1c] sm:$0xf]
    %v252 = vld [vmem:[%s3 + $0x20] sm:$0xf]
    %v253 = vld [vmem:[%s3 + $0x24] sm:$0xf]
    %v254 = vld [vmem:[%s3 + $0x28] sm:$0xf]
    %v255 = vld [vmem:[%s3 + $0x2c] sm:$0xf]
    %v256 = vld [vmem:[%s3 + $0x30] sm:$0xf]
    %v257 = vld [vmem:[%s3 + $0x34] sm:$0xf]
    %v258 = vld [vmem:[%s3 + $0x38] sm:$0xf]
    %v259 = vld [vmem:[%s3 + $0x3c] sm:$0xf]
    %v260 = vld [vmem:[%s4] sm:$0x1]
    %v262 = vlaneseq
    %v263 = vshrl.u32 %v262, 7
    %v264 = vsub.s32 0, %v263
    %v265 = vrot.slane %v260, %v264
    %v283 = vunpack.c.l.b16 %v244
    %v284 = vunpack.c.l.b16 %v245
    %v285 = vunpack.c.l.b16 %v246
    %v286 = vunpack.c.l.b16 %v247
    %v287 = vunpack.c.l.b16 %v248
    %v288 = vunpack.c.l.b16 %v249
    %v289 = vunpack.c.l.b16 %v250
    %v290 = vunpack.c.l.b16 %v251
    %v291 = vunpack.c.l.b16 %v252
    %v292 = vunpack.c.l.b16 %v253
    %v293 = vunpack.c.l.b16 %v254
    %v294 = vunpack.c.l.b16 %v255
    %v295 = vunpack.c.l.b16 %v256
    %v296 = vunpack.c.l.b16 %v257
    %v297 = vunpack.c.l.b16 %v258
    %v298 = vunpack.c.l.b16 %v259
    %v299 = vpack.c.b16 %v284, %v283
    %v300 = vpack.c.b16 %v286, %v285
    %v301 = vpack.c.b16 %v288, %v287
    %v302 = vpack.c.b16 %v290, %v289
    %v303 = vpack.c.b16 %v292, %v291
    %v304 = vpack.c.b16 %v294, %v293
    %v305 = vpack.c.b16 %v296, %v295
    %v306 = vpack.c.b16 %v298, %v297
    %315 = vmatprep.subr.bf16.mxu0 0
    %316 = vmatpush1.bf16.msra.mxu0 %v306
    %317 = vmatprep.subr.bf16.mxu0 0
    %318 = vmatpush1.bf16.msra.mxu0 %v305
    %319 = vmatprep.subr.bf16.mxu0 0
    %320 = vmatpush1.bf16.msra.mxu0 %v304
    %321 = vmatprep.subr.bf16.mxu0 0
    %322 = vmatpush1.bf16.msra.mxu0 %v303
    %323 = vmatprep.subr.bf16.mxu0 0
    %324 = vmatpush1.bf16.msra.mxu0 %v302
    %325 = vmatprep.subr.bf16.mxu0 0
    %326 = vmatpush1.bf16.msra.mxu0 %v301
    %327 = vmatprep.subr.bf16.mxu0 0
    %328 = vmatpush1.bf16.msra.mxu0 %v300
    %329 = vmatprep.subr.bf16.mxu0 0
    %330 = vmatpush1.bf16.msra.mxu0 %v299
    %331 = vmatprep.subr.bf16.mxu0 0
    %332 = vmatpush2.bf16.msra.mxu0 0
    %333 = vmatprep.subr.bf16.mxu0 0
    %334 = vmatpush2.bf16.msra.mxu0 0
    %335 = vmatprep.subr.bf16.mxu0 0
    %336 = vmatpush2.bf16.msra.mxu0 0
    %337 = vmatprep.subr.bf16.mxu0 0
    %338 = vmatpush2.bf16.msra.mxu0 0
    %339 = vmatprep.subr.bf16.mxu0 0
    %340 = vmatpush2.bf16.msra.mxu0 0
    %341 = vmatprep.subr.bf16.mxu0 0
    %342 = vmatpush2.bf16.msra.mxu0 0
    %343 = vmatprep.subr.bf16.mxu0 0
    %344 = vmatpush2.bf16.msra.mxu0 0
    %345 = vmatprep.subr.bf16.mxu0 0
    %346 = vmatpush2.bf16.msra.mxu0 0
    %347 = vmatprep.mubr.bf16.mxu0 0
    %348 = vmatmul.mubr.bf16.gmra.mxu0 %v242
    %v349 = vpop.f32.mrf.mxu0
    %v350 = vadd.f32 %v265, %v349
    %v351 = vpop.f32.mrf.mxu0
    %v352 = vpop.f32.mrf.mxu0
    %v353 = vadd.f32 %v265, %v352
    %v354 = vpop.f32.mrf.mxu0
    %355 = vmatprep.mubr.bf16.mxu0 0
    %356 = vmatmul.mubr.bf16.gmra.mxu0 %v243
    %v357 = vpop.f32.mrf.mxu0
    %v358 = vadd.f32 %v265, %v357
    %v359 = vpop.f32.mrf.mxu0
    %v360 = vpop.f32.mrf.mxu0
    %v361 = vpop.f32.mrf.mxu0
    %362 = vdwg.mxu0
    %vm363 = vcmp.gt.f32.partialorder %v350, 0.0
    %vm364 = vcmp.gt.f32.partialorder %v353, 0.0
    %vm365 = vcmp.gt.f32.partialorder %v358, 0.0
    %v366 = vmul.f32 %v350, 0.01
    %v367 = vmul.f32 %v353, 0.01
    %v368 = vmul.f32 %v358, 0.01
    %v369 = vsel %vm363, %v350, %v366
    %v370 = vsel %vm364, %v353, %v367
    %v371 = vsel %vm365, %v358, %v368
    %372 = vst [vmem:[#allocation2] sm:$0xff] %v369
    %373 = vst [vmem:[#allocation2 + $0x8] sm:$0xff] %v370
    %374 = vst [vmem:[#allocation2 + $0x10] sm:$0xff] %v371
    %p375 = scmp.eq.s32.totalorder 0, 0
    // Predicated region
    $region58: #{tpu_custom_call.1} parent=1 // pred_check
      %p376 = pneg %p375
    $region59: #{tpu_custom_call.1} parent=1 // pred_check_branch
      %378 = sbr.rel (%p376) target = $region61
    $region60: #{tpu_custom_call.1} parent=1 // pred_region
      %v379 = vld [vmem:[#allocation2] sm:$0xff]
      %v380 = vld [vmem:[#allocation2 + $0x8] sm:$0xff]
      %v381 = vld [vmem:[#allocation2 + $0x10] sm:$0xff]
      %v382 = vld [vmem:[#allocation6] sm:$0xff]
      %v383 = vld [vmem:[#allocation6 + $0x8] sm:$0xff]
      %v384 = vld [vmem:[#allocation6 + $0x10] sm:$0xff]
      %vm385 = vcmp.gt.f32.partialorder %v382, 0.0
      %vm386 = vcmp.gt.f32.partialorder %v383, 0.0
      %vm387 = vcmp.gt.f32.partialorder %v384, 0.0
      %v388 = vld [vmem:[#allocation8] sm:$0xff]
      %v389 = vld [vmem:[#allocation8 + $0x8] sm:$0xff]
      %v390 = vld [vmem:[#allocation8 + $0x10] sm:$0xff]
      %v391 = vsel %vm385, %v388, %v379
      %v392 = vsel %vm386, %v389, %v380
      %v393 = vsel %vm387, %v390, %v381
      %394 = vst [vmem:[#allocation2] sm:$0xff] %v391
      %395 = vst [vmem:[#allocation2 + $0x8] sm:$0xff] %v392
      %396 = vst [vmem:[#allocation2 + $0x10] sm:$0xff] %v393
    $region61: #{tpu_custom_call.1} parent=1 // pred_fallthru
      _
    %v397 = vld [vmem:[#allocation2] sm:$0xff]
    %v398 = vld [vmem:[#allocation2 + $0x8] sm:$0xff]
    %v399 = vld [vmem:[#allocation2 + $0x10] sm:$0xff]
    %v400 = vpack.c.bf16 %v398, %v397
    %v401 = vpack.c.bf16 %v399, %v399
    %v402 = vld [vmem:[%s7] sm:$0xf]
    %v403 = vld [vmem:[%s7 + $0x4] sm:$0xf]
    %v404 = vld [vmem:[%s7 + $0x8] sm:$0xf]
    %v405 = vld [vmem:[%s7 + $0xc] sm:$0xf]
    %v406 = vld [vmem:[%s7 + $0x10] sm:$0xf]
    %v407 = vld [vmem:[%s7 + $0x14] sm:$0xf]
    %v408 = vld [vmem:[%s7 + $0x18] sm:$0xf]
    %v409 = vld [vmem:[%s7 + $0x1c] sm:$0xf]
    %v410 = vld [vmem:[%s7 + $0x20] sm:$0xf]
    %v411 = vld [vmem:[%s7 + $0x24] sm:$0xf]
    %v412 = vld [vmem:[%s7 + $0x28] sm:$0xf]
    %v413 = vld [vmem:[%s7 + $0x2c] sm:$0xf]
    %v414 = vld [vmem:[%s7 + $0x30] sm:$0xf]
    %v415 = vld [vmem:[%s7 + $0x34] sm:$0xf]
    %v416 = vld [vmem:[%s7 + $0x38] sm:$0xf]
    %v417 = vld [vmem:[%s7 + $0x3c] sm:$0xf]
    %v418 = vld [vmem:[%s8] sm:$0x1]
    %v420 = vlaneseq
    %v421 = vshrl.u32 %v420, 7
    %v422 = vsub.s32 0, %v421
    %v423 = vrot.slane %v418, %v422
    %v441 = vunpack.c.l.b16 %v402
    %v442 = vunpack.c.l.b16 %v403
    %v443 = vunpack.c.l.b16 %v404
    %v444 = vunpack.c.l.b16 %v405
    %v445 = vunpack.c.l.b16 %v406
    %v446 = vunpack.c.l.b16 %v407
    %v447 = vunpack.c.l.b16 %v408
    %v448 = vunpack.c.l.b16 %v409
    %v449 = vunpack.c.l.b16 %v410
    %v450 = vunpack.c.l.b16 %v411
    %v451 = vunpack.c.l.b16 %v412
    %v452 = vunpack.c.l.b16 %v413
    %v453 = vunpack.c.l.b16 %v414
    %v454 = vunpack.c.l.b16 %v415
    %v455 = vunpack.c.l.b16 %v416
    %v456 = vunpack.c.l.b16 %v417
    %v457 = vpack.c.b16 %v442, %v441
    %v458 = vpack.c.b16 %v444, %v443
    %v459 = vpack.c.b16 %v446, %v445
    %v460 = vpack.c.b16 %v448, %v447
    %v461 = vpack.c.b16 %v450, %v449
    %v462 = vpack.c.b16 %v452, %v451
    %v463 = vpack.c.b16 %v454, %v453
    %v464 = vpack.c.b16 %v456, %v455
    %473 = vmatprep.subr.bf16.mxu0 0
    %474 = vmatpush1.bf16.msra.mxu0 %v464
    %475 = vmatprep.subr.bf16.mxu0 0
    %476 = vmatpush1.bf16.msra.mxu0 %v463
    %477 = vmatprep.subr.bf16.mxu0 0
    %478 = vmatpush1.bf16.msra.mxu0 %v462
    %479 = vmatprep.subr.bf16.mxu0 0
    %480 = vmatpush1.bf16.msra.mxu0 %v461
    %481 = vmatprep.subr.bf16.mxu0 0
    %482 = vmatpush1.bf16.msra.mxu0 %v460
    %483 = vmatprep.subr.bf16.mxu0 0
    %484 = vmatpush1.bf16.msra.mxu0 %v459
    %485 = vmatprep.subr.bf16.mxu0 0
    %486 = vmatpush1.bf16.msra.mxu0 %v458
    %487 = vmatprep.subr.bf16.mxu0 0
    %488 = vmatpush1.bf16.msra.mxu0 %v457
    %489 = vmatprep.subr.bf16.mxu0 0
    %490 = vmatpush2.bf16.msra.mxu0 0
    %491 = vmatprep.subr.bf16.mxu0 0
    %492 = vmatpush2.bf16.msra.mxu0 0
    %493 = vmatprep.subr.bf16.mxu0 0
    %494 = vmatpush2.bf16.msra.mxu0 0
    %495 = vmatprep.subr.bf16.mxu0 0
    %496 = vmatpush2.bf16.msra.mxu0 0
    %497 = vmatprep.subr.bf16.mxu0 0
    %498 = vmatpush2.bf16.msra.mxu0 0
    %499 = vmatprep.subr.bf16.mxu0 0
    %500 = vmatpush2.bf16.msra.mxu0 0
    %501 = vmatprep.subr.bf16.mxu0 0
    %502 = vmatpush2.bf16.msra.mxu0 0
    %503 = vmatprep.subr.bf16.mxu0 0
    %504 = vmatpush2.bf16.msra.mxu0 0
    %505 = vmatprep.mubr.bf16.mxu0 0
    %506 = vmatmul.mubr.bf16.gmra.mxu0 %v400
    %v507 = vpop.f32.mrf.mxu0
    %v508 = vadd.f32 %v423, %v507
    %v509 = vpop.f32.mrf.mxu0
    %v510 = vpop.f32.mrf.mxu0
    %v511 = vadd.f32 %v423, %v510
    %v512 = vpop.f32.mrf.mxu0
    %513 = vmatprep.mubr.bf16.mxu0 0
    %514 = vmatmul.mubr.bf16.gmra.mxu0 %v401
    %v515 = vpop.f32.mrf.mxu0
    %v516 = vadd.f32 %v423, %v515
    %v517 = vpop.f32.mrf.mxu0
    %v518 = vpop.f32.mrf.mxu0
    %v519 = vpop.f32.mrf.mxu0
    %520 = vdwg.mxu0
    %vm521 = vcmp.gt.f32.partialorder %v508, 0.0
    %vm522 = vcmp.gt.f32.partialorder %v511, 0.0
    %vm523 = vcmp.gt.f32.partialorder %v516, 0.0
    %v524 = vmul.f32 %v508, 0.01
    %v525 = vmul.f32 %v511, 0.01
    %v526 = vmul.f32 %v516, 0.01
    %v527 = vsel %vm521, %v508, %v524
    %v528 = vsel %vm522, %v511, %v525
    %v529 = vsel %vm523, %v516, %v526
    %v530 = vpack.c.bf16 %v528, %v527
    %v531 = vpack.c.bf16 %v529, %v529
    %v532 = vld [vmem:[%s9] sm:$0xff]
    %v533 = vld [vmem:[%s9 + $0x8] sm:$0xff]
    %v534 = vld [vmem:[%s9 + $0x10] sm:$0xff]
    %v535 = vld [vmem:[%s9 + $0x18] sm:$0xff]
    %v536 = vld [vmem:[%s9 + $0x20] sm:$0xff]
    %v537 = vld [vmem:[%s9 + $0x28] sm:$0xff]
    %v538 = vld [vmem:[%s9 + $0x30] sm:$0xff]
    %v539 = vld [vmem:[%s9 + $0x38] sm:$0xff]
    %v540 = vld [vmem:[%s9 + $0x40] sm:$0xff]
    %v541 = vld [vmem:[%s9 + $0x48] sm:$0xff]
    %v542 = vld [vmem:[%s9 + $0x50] sm:$0xff]
    %v543 = vld [vmem:[%s9 + $0x58] sm:$0xff]
    %v544 = vld [vmem:[%s9 + $0x60] sm:$0xff]
    %v545 = vld [vmem:[%s9 + $0x68] sm:$0xff]
    %v546 = vld [vmem:[%s9 + $0x70] sm:$0xff]
    %v547 = vld [vmem:[%s9 + $0x78] sm:$0xff]
    %v548 = vld [vmem:[%s10] sm:$0x3]
    %v550 = vlaneseq
    %v551 = vshrl.u32 %v550, 7
    %v552 = vsub.s32 0, %v551
    %v553 = vrot.slane %v548, %v552
    %v554 = vlaneseq
    %v555 = vshrl.u32 %v554, 7
    %v556 = vsub.s32 1, %v555
    %v557 = vrot.slane %v548, %v556
    %v576 = vunpack.c.l.b16 %v532
    %v577 = vunpack.c.h.b16 %v532
    %v578 = vunpack.c.l.b16 %v533
    %v579 = vunpack.c.h.b16 %v533
    %v580 = vunpack.c.l.b16 %v534
    %v581 = vunpack.c.h.b16 %v534
    %v582 = vunpack.c.l.b16 %v535
    %v583 = vunpack.c.h.b16 %v535
    %v584 = vunpack.c.l.b16 %v536
    %v585 = vunpack.c.h.b16 %v536
    %v586 = vunpack.c.l.b16 %v537
    %v587 = vunpack.c.h.b16 %v537
    %v588 = vunpack.c.l.b16 %v538
    %v589 = vunpack.c.h.b16 %v538
    %v590 = vunpack.c.l.b16 %v539
    %v591 = vunpack.c.h.b16 %v539
    %v592 = vunpack.c.l.b16 %v540
    %v593 = vunpack.c.h.b16 %v540
    %v594 = vunpack.c.l.b16 %v541
    %v595 = vunpack.c.h.b16 %v541
    %v596 = vunpack.c.l.b16 %v542
    %v597 = vunpack.c.h.b16 %v542
    %v598 = vunpack.c.l.b16 %v543
    %v599 = vunpack.c.h.b16 %v543
    %v600 = vunpack.c.l.b16 %v544
    %v601 = vunpack.c.h.b16 %v544
    %v602 = vunpack.c.l.b16 %v545
    %v603 = vunpack.c.h.b16 %v545
    %v604 = vunpack.c.l.b16 %v546
    %v605 = vunpack.c.h.b16 %v546
    %v606 = vunpack.c.l.b16 %v547
    %v607 = vunpack.c.h.b16 %v547
    %v608 = vpack.c.b16 %v578, %v576
    %v609 = vpack.c.b16 %v579, %v577
    %v610 = vpack.c.b16 %v582, %v580
    %v611 = vpack.c.b16 %v583, %v581
    %v612 = vpack.c.b16 %v586, %v584
    %v613 = vpack.c.b16 %v587, %v585
    %v614 = vpack.c.b16 %v590, %v588
    %v615 = vpack.c.b16 %v591, %v589
    %v616 = vpack.c.b16 %v594, %v592
    %v617 = vpack.c.b16 %v595, %v593
    %v618 = vpack.c.b16 %v598, %v596
    %v619 = vpack.c.b16 %v599, %v597
    %v620 = vpack.c.b16 %v602, %v600
    %v621 = vpack.c.b16 %v603, %v601
    %v622 = vpack.c.b16 %v606, %v604
    %v623 = vpack.c.b16 %v607, %v605
    %640 = vmatprep.subr.bf16.mxu0 %v623
    %641 = vmatpush1.bf16.msra.mxu0 %v622
    %642 = vmatprep.subr.bf16.mxu0 %v621
    %643 = vmatpush1.bf16.msra.mxu0 %v620
    %644 = vmatprep.subr.bf16.mxu0 %v619
    %645 = vmatpush1.bf16.msra.mxu0 %v618
    %646 = vmatprep.subr.bf16.mxu0 %v617
    %647 = vmatpush1.bf16.msra.mxu0 %v616
    %648 = vmatprep.subr.bf16.mxu0 %v615
    %649 = vmatpush1.bf16.msra.mxu0 %v614
    %650 = vmatprep.subr.bf16.mxu0 %v613
    %651 = vmatpush1.bf16.msra.mxu0 %v612
    %652 = vmatprep.subr.bf16.mxu0 %v611
    %653 = vmatpush1.bf16.msra.mxu0 %v610
    %654 = vmatprep.subr.bf16.mxu0 %v609
    %655 = vmatpush1.bf16.msra.mxu0 %v608
    %656 = vmatprep.subr.bf16.mxu0 0
    %657 = vmatpush2.bf16.msra.mxu0 0
    %658 = vmatprep.subr.bf16.mxu0 0
    %659 = vmatpush2.bf16.msra.mxu0 0
    %660 = vmatprep.subr.bf16.mxu0 0
    %661 = vmatpush2.bf16.msra.mxu0 0
    %662 = vmatprep.subr.bf16.mxu0 0
    %663 = vmatpush2.bf16.msra.mxu0 0
    %664 = vmatprep.subr.bf16.mxu0 0
    %665 = vmatpush2.bf16.msra.mxu0 0
    %666 = vmatprep.subr.bf16.mxu0 0
    %667 = vmatpush2.bf16.msra.mxu0 0
    %668 = vmatprep.subr.bf16.mxu0 0
    %669 = vmatpush2.bf16.msra.mxu0 0
    %670 = vmatprep.subr.bf16.mxu0 0
    %671 = vmatpush2.bf16.msra.mxu0 0
    %672 = vmatprep.mubr.bf16.mxu0 0
    %673 = vmatmul.mubr.bf16.gmra.mxu0 %v530
    %v674 = vpop.f32.mrf.mxu0
    %v675 = vadd.f32 %v553, %v674
    %v676 = vpop.f32.mrf.mxu0
    %v677 = vadd.f32 %v557, %v676
    %v678 = vpop.f32.mrf.mxu0
    %v679 = vadd.f32 %v553, %v678
    %v680 = vpop.f32.mrf.mxu0
    %v681 = vadd.f32 %v557, %v680
    %682 = vmatprep.mubr.bf16.mxu0 0
    %683 = vmatmul.mubr.bf16.gmra.mxu0 %v531
    %v684 = vpop.f32.mrf.mxu0
    %v685 = vadd.f32 %v553, %v684
    %v686 = vpop.f32.mrf.mxu0
    %v687 = vadd.f32 %v557, %v686
    %v688 = vpop.f32.mrf.mxu0
    %v689 = vpop.f32.mrf.mxu0
    %690 = vdwg.mxu0
    %v691 = vxor.u32 %v675, 2147483648
    %v692 = vxor.u32 %v677, 2147483648
    %v693 = vxor.u32 %v679, 2147483648
    %v694 = vxor.u32 %v681, 2147483648
    %v695 = vxor.u32 %v685, 2147483648
    %v696 = vxor.u32 %v687, 2147483648
    %v697 = vmul.f32 %v691, 1.442695
    %v698 = vpow.pop %v697
    %v699 = vmul.f32 %v692, 1.442695
    %v700 = vpow.pop %v699
    %v701 = vmul.f32 %v693, 1.442695
    %v702 = vpow.pop %v701
    %v703 = vmul.f32 %v694, 1.442695
    %v704 = vpow.pop %v703
    %v705 = vmul.f32 %v695, 1.442695
    %v706 = vpow.pop %v705
    %v707 = vmul.f32 %v696, 1.442695
    %v708 = vpow.pop %v707
    %v709 = vadd.f32 %v698, 1.0
    %v710 = vadd.f32 %v700, 1.0
    %v711 = vadd.f32 %v702, 1.0
    %v712 = vadd.f32 %v704, 1.0
    %v713 = vadd.f32 %v706, 1.0
    %v714 = vadd.f32 %v708, 1.0
    %v715 = vrcp.pop %v709
    %v716 = vmul.f32 1.0, %v715
    %v717 = vrcp.pop %v710
    %v718 = vmul.f32 1.0, %v717
    %v719 = vrcp.pop %v711
    %v720 = vmul.f32 1.0, %v719
    %v721 = vrcp.pop %v712
    %v722 = vmul.f32 1.0, %v721
    %v723 = vrcp.pop %v713
    %v724 = vmul.f32 1.0, %v723
    %v725 = vrcp.pop %v714
    %v726 = vmul.f32 1.0, %v725
    %v727 = vpack.c.bf16 %v720, %v716
    %v728 = vpack.c.bf16 %v722, %v718
    %v729 = vpack.c.bf16 %v724, %v724
    %v730 = vpack.c.bf16 %v726, %v726
    %v735 = vunpack.c.l.b16 %v727
    %v736 = vunpack.c.l.b16 %v728
    %v737 = vunpack.c.h.b16 %v727
    %v738 = vunpack.c.h.b16 %v728
    %v739 = vunpack.c.l.b16 %v729
    %v740 = vunpack.c.l.b16 %v730
    %v741 = vpack.c.b16 %v736, %v735
    %v742 = vpack.c.b16 %v738, %v737
    %v743 = vpack.c.b16 %v740, %v739
    %vm747 = vcmask 64516
    %vm748 = vmor %vm747, %vm181
    %749 = vst.msk [vmem:[#allocation9] sm:$0xff] %vm748, %v741
    %750 = vst.msk [vmem:[#allocation9 + $0x8] sm:$0xff] %vm748, %v742
    %751 = vst.msk [vmem:[#allocation9 + $0x10] sm:$0xff] %vm748, %v743
    // Predicated region
    $region62: #{tpu_custom_call.1} parent=1 // pred_check
      _
    $region63: #{tpu_custom_call.1} parent=1 // pred_check_branch
      %753 = sbr.rel (0) target = $region65
    $region64: #{tpu_custom_call.1} parent=1 // pred_region
      %s755 = ssub.s32 384, 384
      %756 = vsyncadd [#allocation5], %s755
      %s757 = sshll.u32 [#allocation9], 4
      %s758 = int_to_ptr.vmem [resolvable:$true] %s757
      %763 = dma.vmem_to_hbm [thread:$0]  %s758, 384, %s11, [#allocation5], 128, 128, 8
    $region65: #{tpu_custom_call.1} parent=1 // pred_fallthru
      _
    // Predicated region
    $region66: #{tpu_custom_call.1} parent=1 // pred_check
      _
    $region67: #{tpu_custom_call.1} parent=1 // pred_check_branch
      %765 = sbr.rel (0) target = $region69
    $region68: #{tpu_custom_call.1} parent=1 // pred_region
      %766 = dma.done [#allocation5], 384
    $region69: #{tpu_custom_call.1} parent=1 // pred_fallthru
      _
    %767 = vsyncpa [#allocation4], 1
    %768 = vsyncpa [#allocation7], 1
    %769 = vsyncpa [#allocation5], 1

</llo_original>
